<compile_context>
chip_gen: v7x
topology: tpu7x:2x2x1
jax: 0.10.0
libtpu: 0.0.40
codegen_flags: <defaults>
</compile_context>

<pallas_src>
import functools

import jax
import jax.numpy as jnp
from jax.experimental import pallas as pl
from jax.experimental.pallas import tpu as pltpu


def _fused_kernel(x_ref, band_ref, brow_ref, o_ref, *, kh_taps, tile_h):
    # x_ref   : (tile_h + KH - 1, WCp)  halo'd channels-last input rows (lane-dense)
    # band_ref: (KH, WCp, NCp)          fused conv1*conv2 weights, banded over (w, wo)
    # brow_ref: (1, NCp)                fused bias tiled over wo (zero in pad columns)
    # o_ref   : (tile_h, NCp)           output rows, column index = wo*Cout + co
    acc = jnp.zeros(o_ref.shape, jnp.float32)
    for kh in range(kh_taps):                      # static, tiny (KH), fully unrolled
        acc = acc + jnp.dot(x_ref[kh:kh + tile_h, :], band_ref[kh],
                            preferred_element_type=jnp.float32)
    # bias added once per tile (outside the loop): a single VPU add
    o_ref[...] = (acc + brow_ref[...]).astype(o_ref.dtype)


def spacio_temporal_conv(x, w1, b1, w2, b2, *, activation=None, tile_h=None):
    """x: (N, Cin, H, W, T) f32; returns (N, Cout, Hout, Wout) like the module."""
    if activation is not None:
        # TODO(synk): unfused two-GEMM path for a mid-activation not wired up.
        raise NotImplementedError("activation between conv1/conv2 not supported")

    N, Cin, H, W, T = x.shape
    Cmid, Cin_w, KH, KW, KT1 = w1.shape
    assert KT1 == 1 and Cin_w == Cin
    Cout, Cmid2, one_a, one_b, time_size = w2.shape
    assert one_a == 1 and one_b == 1 and Cmid2 == Cmid
    assert T == time_size  # forward's y.view(y.shape[:-1]) needs time reduced to 1

    Hout, Wout = H - KH + 1, W - KW + 1
    C = T * Cin                               # folded input channels of the fused conv
    WC, NC = W * C, Wout * Cout
    WCp = pl.cdiv(WC, 128) * 128              # lane-dense contraction dim
    NCp = pl.cdiv(NC, 128) * 128              # lane-dense output row
    if tile_h is None:
        # smallest multiple of 8 covering Hout, capped so VMEM tiles stay small
        tile_h = max(8, min(64, pl.cdiv(Hout, 8) * 8))
    Hout_pad = pl.cdiv(Hout, tile_h) * tile_h
    n_h = Hout_pad // tile_h
    win_h = tile_h + KH - 1
    f32 = jnp.float32

    # ---- single-pass channels-last relayout + halo'd row windows (replaces any
    #      KH*KW (=9x) im2col materialization in HBM).
    xcl = x.transpose(0, 2, 3, 4, 1).reshape(N, H, WC).astype(f32)
    xcl = jnp.pad(xcl, ((0, 0), (0, Hout_pad + KH - 1 - H), (0, WCp - WC)))
    rows = jnp.arange(n_h)[:, None] * tile_h + jnp.arange(win_h)[None, :]
    xwin = xcl[:, rows, :]                                   # (N, n_h, win_h, WCp)

    # ---- fold conv1 & conv2, then absorb the KW window gather into banded weights
    w1s = w1[..., 0].astype(f32)                             # (Cmid, Cin, KH, KW)
    w2s = w2[:, :, 0, 0, :].astype(f32)                      # (Cout, Cmid, T)
    wf = jnp.einsum('mihw,omt->hwtio', w1s, w2s).reshape(KH, KW, C, Cout)
    bf = jnp.einsum('omt,m->o', w2s, b1.astype(f32)) + b2.astype(f32)

    # band[kh, w*C + c, wo*Cout + co] = wf[kh, w - wo, c, co]  (0 <= w - wo < KW)
    sel = (jnp.arange(W)[None, :, None]
           == jnp.arange(KW)[:, None, None] + jnp.arange(Wout)[None, None, :]
           ).astype(f32)                                     # (KW, W, Wout)
    band = jnp.einsum('xwv,hxco->hwcvo', sel, wf).reshape(KH, WC, NC)
    band = jnp.pad(band, ((0, 0), (0, WCp - WC), (0, NCp - NC)))
    brow = jnp.pad(jnp.tile(bf, Wout), (0, NCp - NC)).reshape(1, NCp)

    # ---- cost + VMEM budget (double-buffered tiles, with headroom)
    flops = 2 * N * Hout_pad * KH * WCp * NCp
    bytes_accessed = 4 * (N * n_h * win_h * WCp + KH * WCp * NCp + NCp
                          + N * Hout_pad * NCp)
    vmem_need = 4 * 2 * (win_h * WCp + KH * WCp * NCp + NCp + tile_h * NCp)
    vmem_limit = int(min(100 * 2**20, max(16 * 2**20, 2 * vmem_need)))

    out = pl.pallas_call(
        functools.partial(_fused_kernel, kh_taps=KH, tile_h=tile_h),
        out_shape=jax.ShapeDtypeStruct((N, Hout_pad, NCp), f32),
        grid_spec=pltpu.PrefetchScalarGridSpec(
            num_scalar_prefetch=0,
            grid=(N, n_h),
            in_specs=[
                pl.BlockSpec((None, None, win_h, WCp), lambda n, ih: (n, ih, 0, 0)),
                pl.BlockSpec((KH, WCp, NCp), lambda n, ih: (0, 0, 0)),
                pl.BlockSpec((1, NCp), lambda n, ih: (0, 0)),
            ],
            out_specs=pl.BlockSpec((None, tile_h, NCp), lambda n, ih: (n, ih, 0)),
        ),
        compiler_params=pltpu.CompilerParams(
            dimension_semantics=("parallel", "parallel"),
            vmem_limit_bytes=vmem_limit),
        cost_estimate=pl.CostEstimate(flops=flops, transcendentals=0,
                                      bytes_accessed=bytes_accessed),
    )(xwin, band, brow)

    # strip padded rows / columns, un-interleave (wo, co), go to NCHW
    out = out[:, :Hout, :NC].reshape(N, Hout, Wout, Cout).transpose(0, 3, 1, 2)
    return out.astype(x.dtype)


def reference(x, w1, b1, w2, b2):
    """Pure-JAX reference matching the PyTorch module (defaults, no activation)."""
    N, Cin, H, W, T = x.shape
    Cout, _, KH, KW, _ = w1.shape
    Hout, Wout = H - KH + 1, W - KW + 1
    y1 = jnp.zeros((N, Cout, Hout, Wout, T), jnp.float32)
    for i in range(KH):
        for j in range(KW):
            y1 = y1 + jnp.einsum('nchwt,oc->nohwt',
                                 x[:, :, i:i + Hout, j:j + Wout, :],
                                 w1[:, :, i, j, 0])
    y1 = y1 + b1[None, :, None, None, None]
    # conv2: (1,1,time_size) valid conv with T == time_size -> contraction over (c, t)
    y2 = jnp.einsum('nchwt,oct->nohw', y1, w2[:, :, 0, 0, :])
    y2 = y2 + b2[None, :, None, None]
    return y2  # == conv2_out.view(shape[:-1])


if __name__ == "__main__":
    key = jax.random.PRNGKey(0)
    N, Cin, Cout, H, W = 2, 4, 8, 16, 16
    KH = KW = 3
    time_size = 2

    k = jax.random.split(key, 5)
    x = jax.random.normal(k[0], (N, Cin, H, W, time_size), jnp.float32)
    w1 = jax.random.normal(k[1], (Cout, Cin, KH, KW, 1), jnp.float32) * 0.1
    b1 = jax.random.normal(k[2], (Cout,), jnp.float32) * 0.1
    w2 = jax.random.normal(k[3], (Cout, Cout, 1, 1, time_size), jnp.float32) * 0.1
    b2 = jax.random.normal(k[4], (Cout,), jnp.float32) * 0.1

    out = jax.block_until_ready(spacio_temporal_conv(x, w1, b1, w2, b2))
    ref = reference(x, w1, b1, w2, b2)

    assert out.shape == (N, Cout, H - KH + 1, W - KW + 1), out.shape
    max_err = float(jnp.max(jnp.abs(out - ref)))
    assert jnp.allclose(out, ref, rtol=2e-4, atol=2e-4), f"max_err={max_err}"
    print("KERNEL_OK")
</pallas_src>

<mosaic_0001>
module attributes {stable_mosaic.version = 11 : i64} {
  func.func @_fused_kernel(%arg0: i32, %arg1: i32, %arg2: memref<1x1x18x128xf32, #tpu.memory_space<vmem>>, %arg3: memref<3x128x128xf32, #tpu.memory_space<vmem>>, %arg4: memref<1x128xf32, #tpu.memory_space<vmem>>, %arg5: memref<1x16x128xf32, #tpu.memory_space<vmem>>) attributes {dimension_semantics = [#tpu.dimension_semantics<parallel>, #tpu.dimension_semantics<parallel>], iteration_bounds = array<i64: 2, 1>, scalar_prefetch = 0 : i64, scratch_operands = 0 : i64, tpu.core_type = #tpu.core_type<tc>, window_params = [{transform_indices = @transform_0, window_bounds = array<i64: 1, 1, 18, 128>}, {pipeline_mode = #tpu.pipeline_mode<synchronous>, transform_indices = @transform_1, window_bounds = array<i64: 3, 128, 128>}, {pipeline_mode = #tpu.pipeline_mode<synchronous>, transform_indices = @transform_2, window_bounds = array<i64: 1, 128>}, {transform_indices = @transform_3, window_bounds = array<i64: 1, 16, 128>}]} {
    %cst = arith.constant 0.000000e+00 : f32
    %0 = vector.broadcast %cst : f32 to vector<16x128xf32>
    %c0 = arith.constant 0 : index
    %c0_0 = arith.constant 0 : index
    %c0_1 = arith.constant 0 : index
    %c0_2 = arith.constant 0 : index
    %1 = vector.load %arg2[%c0, %c0_0, %c0_1, %c0_2] : memref<1x1x18x128xf32, #tpu.memory_space<vmem>>, vector<1x1x16x128xf32>
    %2 = vector.shape_cast %1 : vector<1x1x16x128xf32> to vector<16x128xf32>
    %c0_3 = arith.constant 0 : index
    %c0_4 = arith.constant 0 : index
    %c0_5 = arith.constant 0 : index
    %3 = vector.load %arg3[%c0_3, %c0_4, %c0_5] : memref<3x128x128xf32, #tpu.memory_space<vmem>>, vector<1x128x128xf32>
    %4 = vector.shape_cast %3 : vector<1x128x128xf32> to vector<128x128xf32>
    %cst_6 = arith.constant dense<0.000000e+00> : vector<16x128xf32>
    %5 = tpu.matmul %2, %4, %cst_6 {dimension_numbers = #tpu.dot_dimension_numbers<[1], [0], [0], [1], [0, 0, 1, 1], [], []>} : vector<16x128xf32>, vector<128x128xf32>, vector<16x128xf32> -> vector<16x128xf32>
    %6 = arith.addf %0, %5 : vector<16x128xf32>
    %c0_7 = arith.constant 0 : index
    %c0_8 = arith.constant 0 : index
    %c1 = arith.constant 1 : index
    %c0_9 = arith.constant 0 : index
    %7 = vector.load %arg2[%c0_7, %c0_8, %c1, %c0_9] : memref<1x1x18x128xf32, #tpu.memory_space<vmem>>, vector<1x1x16x128xf32>
    %8 = vector.shape_cast %7 : vector<1x1x16x128xf32> to vector<16x128xf32>
    %c1_10 = arith.constant 1 : index
    %c0_11 = arith.constant 0 : index
    %c0_12 = arith.constant 0 : index
    %9 = vector.load %arg3[%c1_10, %c0_11, %c0_12] : memref<3x128x128xf32, #tpu.memory_space<vmem>>, vector<1x128x128xf32>
    %10 = vector.shape_cast %9 : vector<1x128x128xf32> to vector<128x128xf32>
    %cst_13 = arith.constant dense<0.000000e+00> : vector<16x128xf32>
    %11 = tpu.matmul %8, %10, %cst_13 {dimension_numbers = #tpu.dot_dimension_numbers<[1], [0], [0], [1], [0, 0, 1, 1], [], []>} : vector<16x128xf32>, vector<128x128xf32>, vector<16x128xf32> -> vector<16x128xf32>
    %12 = arith.addf %6, %11 : vector<16x128xf32>
    %c0_14 = arith.constant 0 : index
    %c0_15 = arith.constant 0 : index
    %c2 = arith.constant 2 : index
    %c0_16 = arith.constant 0 : index
    %13 = vector.load %arg2[%c0_14, %c0_15, %c2, %c0_16] : memref<1x1x18x128xf32, #tpu.memory_space<vmem>>, vector<1x1x16x128xf32>
    %14 = vector.shape_cast %13 : vector<1x1x16x128xf32> to vector<16x128xf32>
    %c2_17 = arith.constant 2 : index
    %c0_18 = arith.constant 0 : index
    %c0_19 = arith.constant 0 : index
    %15 = vector.load %arg3[%c2_17, %c0_18, %c0_19] : memref<3x128x128xf32, #tpu.memory_space<vmem>>, vector<1x128x128xf32>
    %16 = vector.shape_cast %15 : vector<1x128x128xf32> to vector<128x128xf32>
    %cst_20 = arith.constant dense<0.000000e+00> : vector<16x128xf32>
    %17 = tpu.matmul %14, %16, %cst_20 {dimension_numbers = #tpu.dot_dimension_numbers<[1], [0], [0], [1], [0, 0, 1, 1], [], []>} : vector<16x128xf32>, vector<128x128xf32>, vector<16x128xf32> -> vector<16x128xf32>
    %18 = arith.addf %12, %17 : vector<16x128xf32>
    %c0_21 = arith.constant 0 : index
    %c0_22 = arith.constant 0 : index
    %19 = vector.load %arg4[%c0_21, %c0_22] : memref<1x128xf32, #tpu.memory_space<vmem>>, vector<1x128xf32>
    %20 = vector.broadcast %19 : vector<1x128xf32> to vector<16x128xf32>
    %21 = arith.addf %18, %20 : vector<16x128xf32>
    %c0_23 = arith.constant 0 : index
    %c0_24 = arith.constant 0 : index
    %c0_25 = arith.constant 0 : index
    %22 = vector.load %arg5[%c0_23, %c0_24, %c0_25] : memref<1x16x128xf32, #tpu.memory_space<vmem>>, vector<1x16x128xf32>
    %23 = vector.shape_cast %22 : vector<1x16x128xf32> to vector<16x128xf32>
    %24 = vector.shape_cast %21 : vector<16x128xf32> to vector<1x16x128xf32>
    tpu.vector_store %arg5[%c0_23, %c0_24, %c0_25], %24 {strides = array<i32>} : memref<1x16x128xf32, #tpu.memory_space<vmem>>, vector<1x16x128xf32>,
    return
  }
  func.func @transform_0(%arg0: i32, %arg1: i32) -> (i32, i32, i32, i32) {
    %c0_i32 = arith.constant 0 : i32
    %c0_i32_0 = arith.constant 0 : i32
    %c0_i32_1 = arith.constant 0 : i32
    return %arg0, %arg1, %c0_i32, %c0_i32_0 : i32, i32, i32, i32
  }
  func.func @transform_1(%arg0: i32, %arg1: i32) -> (i32, i32, i32) {
    %c0_i32 = arith.constant 0 : i32
    %c0_i32_0 = arith.constant 0 : i32
    %c0_i32_1 = arith.constant 0 : i32
    %c0_i32_2 = arith.constant 0 : i32
    return %c0_i32, %c0_i32_0, %c0_i32_1 : i32, i32, i32
  }
  func.func @transform_2(%arg0: i32, %arg1: i32) -> (i32, i32) {
    %c0_i32 = arith.constant 0 : i32
    %c0_i32_0 = arith.constant 0 : i32
    %c0_i32_1 = arith.constant 0 : i32
    return %c0_i32, %c0_i32_0 : i32, i32
  }
  func.func @transform_3(%arg0: i32, %arg1: i32) -> (i32, i32, i32) {
    %c0_i32 = arith.constant 0 : i32
    %c0_i32_0 = arith.constant 0 : i32
    return %arg0, %arg1, %c0_i32 : i32, i32, i32
  }
}

</mosaic_0001>

<llo_original>
// kernel: tpu_custom_call.1
$region0: #{tpu_custom_call.1}
  #allocation0 [shape = 'u32[]', space=smem, size = 0x4, offset = 0x4, fixed_abs, tag = 'smem constant byte address 0x4 - core index']
  #allocation1 [shape = 'u32[144,128]{1,0:T(1,128)}', space=vmem, size = 0x12000, scoped, tag = 'internal scratch']
  %s0 = inlined_call_operand.vmem [shape: f32[2,1,18,128], index: 0, kind: input, shape index: {}]
  %s1 = inlined_call_operand.hbm [shape: f32[3,128,128], index: 1, kind: input, shape index: {}]
  %s2 = inlined_call_operand.vmem [shape: f32[1,128], index: 2, kind: input, shape index: {}]
  %s3 = inlined_call_operand.hbm [shape: f32[2,16,128], index: 3, kind: output, shape index: {}]
  %s4 = sld [smem:[#allocation0]]
  $region49: #{tpu_custom_call.1} parent=0
    _
  %s6 = ssub.s32 1, %s4
  %s7 = scalar_select 0, %s6, %s4
  $region1: #{tpu_custom_call.1} parent=0
    #allocation2 [shape = 'u8[196608]{0}', space=vmem, size = 0x30000, scoped, tag = 'input window, operand 1, single buffered']
    #allocation3 [shape = 's32[2]{0}', space=sflag, size = 0x8, scoped, tag = 'scoped memory for tpu_custom_call.1']
    #allocation4 [shape = 's32[2]{0}', space=sflag, size = 0x8, scoped, tag = 'scoped memory for tpu_custom_call.1']
    #allocation5 [shape = 'u8[16384]{0}', space=vmem, size = 0x4000, scoped, tag = 'output window, operand 0']
    %8 = vsyncpa [#allocation3], 0
    %9 = vsyncpa [#allocation4], 0
    %s10 = scalar_lea.sflag [#allocation4], 1
    %11 = vsyncpa %s10, 0
    loop: start=0, step=1, limit=4
    $region2: #{tpu_custom_call.1} parent=1 // loop_pre_header
      _
    $region3: #{tpu_custom_call.1} parent=1 // loop_header
      %s13 = sphi 0, %s17
      %p14 = scmp.ge.s32.totalorder %s13, 4
      %s20 = sphi 0, %s32
      %s21 = sphi 0, %s28
      %s22 = sphi 0, %s20
      %s23 = sphi 0, %s21
      %s24 = sphi 0, %s22
      %s25 = sphi 0, %s23
      %s37 = sphi 0, %s39
      %s40 = sphi 0, %s37
      %s41 = sphi 0, %s40
      %s57 = sphi 0, %s41
      %s61 = sphi 0, %s61
      %s63 = sphi 0, %s61
      %s64 = sphi 0, %s63
      %s78 = sphi 0, %s64
      %s82 = sphi 0, %s82
      %s84 = sphi 0, %s82
      %s85 = sphi 0, %s84
      %s99 = sphi 0, %s85
      %s107 = sphi 0, %s109
      %s110 = sphi 0, %s107
      %s111 = sphi 0, %s110
      %s127 = sphi 0, %s111
    $region4: #{tpu_custom_call.1} parent=1 // loop_header_branch
      %16 = sbr.rel (%p14) target = $region8
    $region5: #{tpu_custom_call.1} parent=1 // loop_body
      %s18 = ssub.s32 %s13, 1
      %s19 = ssub.s32 %s13, 2
      %s26 = sadd.s32 1, %s21
      %p27 = scmp.ge.s32.totalorder %s26, 1
      %s28 = scalar_select %p27, 0, %s26
      %s29 = sadd.s32 1, %s20
      %s30 = scalar_select %p27, %s29, %s20
      %p31 = scmp.ge.s32.totalorder %s30, 2
      %s32 = scalar_select %p31, 0, %s30
      %s33 = ssub.s32 %s20, %s32
      %s34 = ssub.s32 %s21, %s28
      %s35 = sor.u32 %s33, %s34
      %p36 = scmp.eq.s32.totalorder %s35, 0
      %s38 = sadd.s32 %s37, 1
      %s39 = scalar_select %p36, %s37, %s38
      %p42 = pneg %p36
      %p43 = scmp.eq.s32.totalorder %s13, 1
      %p44 = por %p42, %p43
      %p45 = scmp.ne.s32.totalorder %s37, %s40
      %p46 = scmp.eq.s32.totalorder %s13, 0
      %p47 = por %p45, %p46
      %p48 = scmp.ne.s32.totalorder %s37, %s40
      %p49 = scmp.eq.s32.totalorder %s18, 1
      %p50 = por %p48, %p49
      %p51 = scmp.ne.s32.totalorder %s40, %s41
      %p52 = scmp.eq.s32.totalorder %s18, 0
      %p53 = por %p51, %p52
      %p54 = scmp.ne.s32.totalorder %s40, %s41
      %p55 = scmp.eq.s32.totalorder %s19, 1
      %p56 = por %p54, %p55
      %p58 = scmp.ne.s32.totalorder %s41, %s57
      %p59 = scmp.eq.s32.totalorder %s19, 0
      %p60 = por %p58, %p59
      %s62 = sadd.s32 %s61, 1
      %p65 = scmp.eq.s32.totalorder %s13, 1
      %p66 = scmp.ne.s32.totalorder %s61, %s63
      %p67 = scmp.eq.s32.totalorder %s13, 0
      %p68 = por %p66, %p67
      %p69 = scmp.ne.s32.totalorder %s61, %s63
      %p70 = scmp.eq.s32.totalorder %s18, 1
      %p71 = por %p69, %p70
      %p72 = scmp.ne.s32.totalorder %s63, %s64
      %p73 = scmp.eq.s32.totalorder %s18, 0
      %p74 = por %p72, %p73
      %p75 = scmp.ne.s32.totalorder %s63, %s64
      %p76 = scmp.eq.s32.totalorder %s19, 1
      %p77 = por %p75, %p76
      %p79 = scmp.ne.s32.totalorder %s64, %s78
      %p80 = scmp.eq.s32.totalorder %s19, 0
      %p81 = por %p79, %p80
      %s83 = sadd.s32 %s82, 1
      %p86 = scmp.eq.s32.totalorder %s13, 1
      %p87 = scmp.ne.s32.totalorder %s82, %s84
      %p88 = scmp.eq.s32.totalorder %s13, 0
      %p89 = por %p87, %p88
      %p90 = scmp.ne.s32.totalorder %s82, %s84
      %p91 = scmp.eq.s32.totalorder %s18, 1
      %p92 = por %p90, %p91
      %p93 = scmp.ne.s32.totalorder %s84, %s85
      %p94 = scmp.eq.s32.totalorder %s18, 0
      %p95 = por %p93, %p94
      %p96 = scmp.ne.s32.totalorder %s84, %s85
      %p97 = scmp.eq.s32.totalorder %s19, 1
      %p98 = por %p96, %p97
      %p100 = scmp.ne.s32.totalorder %s85, %s99
      %p101 = scmp.eq.s32.totalorder %s19, 0
      %p102 = por %p100, %p101
      %s103 = ssub.s32 %s20, %s32
      %s104 = ssub.s32 %s21, %s28
      %s105 = sor.u32 %s103, %s104
      %p106 = scmp.eq.s32.totalorder %s105, 0
      %s108 = sadd.s32 %s107, 1
      %s109 = scalar_select %p106, %s107, %s108
      %p112 = pneg %p106
      %p113 = scmp.eq.s32.totalorder %s13, 1
      %p114 = por %p112, %p113
      %p115 = scmp.ne.s32.totalorder %s107, %s110
      %p116 = scmp.eq.s32.totalorder %s13, 0
      %p117 = por %p115, %p116
      %p118 = scmp.ne.s32.totalorder %s107, %s110
      %p119 = scmp.eq.s32.totalorder %s18, 1
      %p120 = por %p118, %p119
      %p121 = scmp.ne.s32.totalorder %s110, %s111
      %p122 = scmp.eq.s32.totalorder %s18, 0
      %p123 = por %p121, %p122
      %p124 = scmp.ne.s32.totalorder %s110, %s111
      %p125 = scmp.eq.s32.totalorder %s19, 1
      %p126 = por %p124, %p125
      %p128 = scmp.ne.s32.totalorder %s111, %s127
      %p129 = scmp.eq.s32.totalorder %s19, 0
      %p130 = por %p128, %p129
      %p131 = scmp.le.s32.totalorder 1, %s13
      %p132 = scmp.lt.s32.totalorder %s13, 3
      %p133 = pnand %p131, %p132
      %p134 = pneg %p133
      // Predicated region
      $region9: #{tpu_custom_call.1} parent=5 // pred_check
        _
      $region10: #{tpu_custom_call.1} parent=5 // pred_check_branch
        %136 = sbr.rel (%p133) target = $region12
      $region11: #{tpu_custom_call.1} parent=5 // pred_region
        %s137 = ssub.s32 %s13, 1
        // Predicated region
        $region13: #{tpu_custom_call.1} parent=11 // pred_check
          %p138 = pneg %p74
        $region14: #{tpu_custom_call.1} parent=11 // pred_check_branch
          %140 = sbr.rel (%p138) target = $region16
        $region15: #{tpu_custom_call.1} parent=11 // pred_region
          %s142 = ssub.s32 6144, 6144
          %143 = vsyncadd [#allocation3], %s142
          %s144 = sshll.u32 [#allocation2], 4
          %s145 = int_to_ptr.vmem [resolvable:$true] %s144
          %150 = dma.hbm_to_vmem [thread:$0]  %s1, 6144, %s145, [#allocation3], 128, 128, 8
        $region16: #{tpu_custom_call.1} parent=11 // pred_fallthru
          _
        // Predicated region
        $region17: #{tpu_custom_call.1} parent=11 // pred_check
          %p151 = pneg %p95
        $region18: #{tpu_custom_call.1} parent=11 // pred_check_branch
          %153 = sbr.rel (%p151) target = $region20
        $region19: #{tpu_custom_call.1} parent=11 // pred_region
          _
        $region20: #{tpu_custom_call.1} parent=11 // pred_fallthru
          _
      $region12: #{tpu_custom_call.1} parent=5 // pred_fallthru
        _
      %p154 = scmp.lt.s32.totalorder %s13, 2
      // Predicated region
      $region21: #{tpu_custom_call.1} parent=5 // pred_check
        %p155 = pneg %p154
      $region22: #{tpu_custom_call.1} parent=5 // pred_check_branch
        %157 = sbr.rel (%p155) target = $region24
      $region23: #{tpu_custom_call.1} parent=5 // pred_region
        // Predicated region
        $region25: #{tpu_custom_call.1} parent=23 // pred_check
          %p158 = pneg %p47
        $region26: #{tpu_custom_call.1} parent=23 // pred_check_branch
          %160 = sbr.rel (%p158) target = $region28
        $region27: #{tpu_custom_call.1} parent=23 // pred_region
          %p161 = scmp.lt.s32.totalorder %s20, 1
          %s162 = scalar_select %p161, %s20, 1
          %p163 = scmp.lt.s32.totalorder %s21, 0
          %s164 = scalar_select %p163, %s21, 0
          %s165 = smul.addr %s164, 3
          %s166 = smul.addr %s162, 3
          %s167 = sadd.s32 %s165, %s166
          %s168 = smul.addr %s167, 8
          %s169 = scalar_lea.vmem %s0, %s168
        $region28: #{tpu_custom_call.1} parent=23 // pred_fallthru
          _
      $region24: #{tpu_custom_call.1} parent=5 // pred_fallthru
        _
      %p170 = scmp.le.s32.totalorder 1, %s13
      %p171 = scmp.lt.s32.totalorder %s13, 3
      %p172 = pnand %p170, %p171
      %p173 = pneg %p172
      // Predicated region
      $region29: #{tpu_custom_call.1} parent=5 // pred_check
        _
      $region30: #{tpu_custom_call.1} parent=5 // pred_check_branch
        %175 = sbr.rel (%p172) target = $region32
      $region31: #{tpu_custom_call.1} parent=5 // pred_region
        %s176 = ssub.s32 %s13, 1
        // Predicated region
        $region33: #{tpu_custom_call.1} parent=31 // pred_check
          %p177 = pneg %p74
        $region34: #{tpu_custom_call.1} parent=31 // pred_check_branch
          %179 = sbr.rel (%p177) target = $region36
        $region35: #{tpu_custom_call.1} parent=31 // pred_region
          %180 = dma.done [#allocation3], 6144
        $region36: #{tpu_custom_call.1} parent=31 // pred_fallthru
          _
        %p181 = scmp.lt.s32.totalorder %s22, 1
        %s182 = scalar_select %p181, %s22, 1
        %p183 = scmp.lt.s32.totalorder %s23, 0
        %s184 = scalar_select %p183, %s23, 0
        %s185 = smul.addr %s184, 3
        %s186 = smul.addr %s182, 3
        %s187 = sadd.s32 %s185, %s186
        %s188 = smul.addr %s187, 8
        %s189 = scalar_lea.vmem %s0, %s188
        %p190 = pneg %p53
        %p191 = pneg %p50
        %p192 = pneg %p74
        %p193 = pneg %p71
        %p194 = pneg %p95
        %p195 = pneg %p92
        %p196 = pneg %p123
        %p197 = pneg %p120
        %s198 = sand.u32 %s110, 1
        %s199 = scalar_lea.sflag [#allocation4], %s198
        %s200 = sand.u32 %s110, 1
        %s201 = smul.addr %s200, 16
        %s202 = scalar_lea.vmem [#allocation5], %s201
        %p203 = scmp.lt.s32.totalorder %s22, 1
        %s204 = scalar_select %p203, %s22, 1
        %p205 = scmp.lt.s32.totalorder %s23, 0
        %s206 = scalar_select %p205, %s23, 0
        %s207 = smul.addr %s206, 3
        %s208 = smul.addr %s204, 3
        %s209 = sadd.s32 %s207, %s208
        %s210 = smul.addr %s209, 8
        %s211 = scalar_lea.vmem %s0, %s210
        %s212 = smul.u32 2, %s23
        %v213 = vld [vmem:[%s211] sm:$0xff]
        %v214 = vld [vmem:[%s211 + $0x8] sm:$0xff]
        %v215 = vld [vmem:[#allocation2] sm:$0xff]
        %v216 = vld [vmem:[#allocation2 + $0x8] sm:$0xff]
        %v217 = vld [vmem:[#allocation2 + $0x10] sm:$0xff]
        %v218 = vld [vmem:[#allocation2 + $0x18] sm:$0xff]
        %v219 = vld [vmem:[#allocation2 + $0x20] sm:$0xff]
        %v220 = vld [vmem:[#allocation2 + $0x28] sm:$0xff]
        %v221 = vld [vmem:[#allocation2 + $0x30] sm:$0xff]
        %v222 = vld [vmem:[#allocation2 + $0x38] sm:$0xff]
        %v223 = vld [vmem:[#allocation2 + $0x40] sm:$0xff]
        %v224 = vld [vmem:[#allocation2 + $0x48] sm:$0xff]
        %v225 = vld [vmem:[#allocation2 + $0x50] sm:$0xff]
        %v226 = vld [vmem:[#allocation2 + $0x58] sm:$0xff]
        %v227 = vld [vmem:[#allocation2 + $0x60] sm:$0xff]
        %v228 = vld [vmem:[#allocation2 + $0x68] sm:$0xff]
        %v229 = vld [vmem:[#allocation2 + $0x70] sm:$0xff]
        %v230 = vld [vmem:[#allocation2 + $0x78] sm:$0xff]
        %v231 = vld [vmem:[%s211 + $0x1] sm:$0xff]
        %v232 = vld [vmem:[%s211 + $0x9] sm:$0xff]
        %s233 = scalar_lea.vmem [#allocation2], 128
        %v234 = vld [vmem:[%s233] sm:$0xff]
        %v235 = vld [vmem:[%s233 + $0x8] sm:$0xff]
        %v236 = vld [vmem:[%s233 + $0x10] sm:$0xff]
        %v237 = vld [vmem:[%s233 + $0x18] sm:$0xff]
        %v238 = vld [vmem:[%s233 + $0x20] sm:$0xff]
        %v239 = vld [vmem:[%s233 + $0x28] sm:$0xff]
        %v240 = vld [vmem:[%s233 + $0x30] sm:$0xff]
        %v241 = vld [vmem:[%s233 + $0x38] sm:$0xff]
        %v242 = vld [vmem:[%s233 + $0x40] sm:$0xff]
        %v243 = vld [vmem:[%s233 + $0x48] sm:$0xff]
        %v244 = vld [vmem:[%s233 + $0x50] sm:$0xff]
        %v245 = vld [vmem:[%s233 + $0x58] sm:$0xff]
        %v246 = vld [vmem:[%s233 + $0x60] sm:$0xff]
        %v247 = vld [vmem:[%s233 + $0x68] sm:$0xff]
        %v248 = vld [vmem:[%s233 + $0x70] sm:$0xff]
        %v249 = vld [vmem:[%s233 + $0x78] sm:$0xff]
        %250 = vmatprep.subr.mxu0 0.0
        %251 = vmatpush1.msra.mxu0 %v234
        %252 = vmatprep.subr.mxu0 0.0
        %253 = vmatpush1.msra.mxu0 %v235
        %254 = vmatprep.subr.mxu0 0.0
        %255 = vmatpush1.msra.mxu0 %v236
        %256 = vmatprep.subr.mxu0 0.0
        %257 = vmatpush1.msra.mxu0 %v237
        %258 = vmatprep.subr.mxu0 0.0
        %259 = vmatpush1.msra.mxu0 %v238
        %260 = vmatprep.subr.mxu0 0.0
        %261 = vmatpush1.msra.mxu0 %v239
        %262 = vmatprep.subr.mxu0 0.0
        %263 = vmatpush1.msra.mxu0 %v240
        %264 = vmatprep.subr.mxu0 0.0
        %265 = vmatpush1.msra.mxu0 %v241
        %266 = vmatprep.subr.mxu0 0.0
        %267 = vmatpush1.msra.mxu0 %v242
        %268 = vmatprep.subr.mxu0 0.0
        %269 = vmatpush1.msra.mxu0 %v243
        %270 = vmatprep.subr.mxu0 0.0
        %271 = vmatpush1.msra.mxu0 %v244
        %272 = vmatprep.subr.mxu0 0.0
        %273 = vmatpush1.msra.mxu0 %v245
        %274 = vmatprep.subr.mxu0 0.0
        %275 = vmatpush1.msra.mxu0 %v246
        %276 = vmatprep.subr.mxu0 0.0
        %277 = vmatpush1.msra.mxu0 %v247
        %278 = vmatprep.subr.mxu0 0.0
        %279 = vmatpush1.msra.mxu0 %v248
        %280 = vmatprep.subr.mxu0 0.0
        %281 = vmatpush1.msra.mxu0 %v249
        %282 = vmatprep.subr.mxu0 0.0
        %283 = vmatpush1.msra.mxu0 0.0
        %284 = vmatprep.subr.mxu0 0.0
        %285 = vmatpush1.msra.mxu0 0.0
        %286 = vmatprep.subr.mxu0 0.0
        %287 = vmatpush1.msra.mxu0 0.0
        %288 = vmatprep.subr.mxu0 0.0
        %289 = vmatpush1.msra.mxu0 0.0
        %290 = vmatprep.subr.mxu0 0.0
        %291 = vmatpush1.msra.mxu0 0.0
        %292 = vmatprep.subr.mxu0 0.0
        %293 = vmatpush1.msra.mxu0 0.0
        %294 = vmatprep.subr.mxu0 0.0
        %295 = vmatpush1.msra.mxu0 0.0
        %296 = vmatprep.subr.mxu0 0.0
        %297 = vmatpush1.msra.mxu0 0.0
        %298 = vmatprep.subr.mxu0 0.0
        %299 = vmatpush1.msra.mxu0 0.0
        %300 = vmatprep.subr.mxu0 0.0
        %301 = vmatpush1.msra.mxu0 0.0
        %302 = vmatprep.subr.mxu0 0.0
        %303 = vmatpush1.msra.mxu0 0.0
        %304 = vmatprep.subr.mxu0 0.0
        %305 = vmatpush1.msra.mxu0 0.0
        %306 = vmatprep.subr.mxu0 0.0
        %307 = vmatpush1.msra.mxu0 0.0
        %308 = vmatprep.subr.mxu0 0.0
        %309 = vmatpush1.msra.mxu0 0.0
        %310 = vmatprep.subr.mxu0 0.0
        %311 = vmatpush1.msra.mxu0 0.0
        %312 = vmatprep.subr.mxu0 0.0
        %313 = vmatpush1.msra.mxu0 0.0
        %314 = vmatprep.mubr.f32.mxu0 0.0
        %315 = vmatmul.mubr.f32.gmra.mrb[0].mxu0 %v231
        %v316 = vpop.f32.mrb[0].mxu0
        %v317 = vadd.f32 0.0, %v316
        %v318 = vpop.f32.mrb[0].mxu0
        %319 = vmatprep.mubr.f32.mxu0 0.0
        %320 = vmatmul.mubr.f32.gmra.mrb[0].mxu0 %v232
        %v321 = vpop.f32.mrb[0].mxu0
        %v322 = vadd.f32 0.0, %v321
        %v323 = vpop.f32.mrb[0].mxu0
        %324 = vdwg.mxu0
        %325 = vmatprep.subr.mxu0 0.0
        %326 = vmatpush1.msra.mxu0 %v215
        %327 = vmatprep.subr.mxu0 0.0
        %328 = vmatpush1.msra.mxu0 %v216
        %329 = vmatprep.subr.mxu0 0.0
        %330 = vmatpush1.msra.mxu0 %v217
        %331 = vmatprep.subr.mxu0 0.0
        %332 = vmatpush1.msra.mxu0 %v218
        %333 = vmatprep.subr.mxu0 0.0
        %334 = vmatpush1.msra.mxu0 %v219
        %335 = vmatprep.subr.mxu0 0.0
        %336 = vmatpush1.msra.mxu0 %v220
        %337 = vmatprep.subr.mxu0 0.0
        %338 = vmatpush1.msra.mxu0 %v221
        %339 = vmatprep.subr.mxu0 0.0
        %340 = vmatpush1.msra.mxu0 %v222
        %341 = vmatprep.subr.mxu0 0.0
        %342 = vmatpush1.msra.mxu0 %v223
        %343 = vmatprep.subr.mxu0 0.0
        %344 = vmatpush1.msra.mxu0 %v224
        %345 = vmatprep.subr.mxu0 0.0
        %346 = vmatpush1.msra.mxu0 %v225
        %347 = vmatprep.subr.mxu0 0.0
        %348 = vmatpush1.msra.mxu0 %v226
        %349 = vmatprep.subr.mxu0 0.0
        %350 = vmatpush1.msra.mxu0 %v227
        %351 = vmatprep.subr.mxu0 0.0
        %352 = vmatpush1.msra.mxu0 %v228
        %353 = vmatprep.subr.mxu0 0.0
        %354 = vmatpush1.msra.mxu0 %v229
        %355 = vmatprep.subr.mxu0 0.0
        %356 = vmatpush1.msra.mxu0 %v230
        %357 = vmatprep.subr.mxu0 0.0
        %358 = vmatpush1.msra.mxu0 0.0
        %359 = vmatprep.subr.mxu0 0.0
        %360 = vmatpush1.msra.mxu0 0.0
        %361 = vmatprep.subr.mxu0 0.0
        %362 = vmatpush1.msra.mxu0 0.0
        %363 = vmatprep.subr.mxu0 0.0
        %364 = vmatpush1.msra.mxu0 0.0
        %365 = vmatprep.subr.mxu0 0.0
        %366 = vmatpush1.msra.mxu0 0.0
        %367 = vmatprep.subr.mxu0 0.0
        %368 = vmatpush1.msra.mxu0 0.0
        %369 = vmatprep.subr.mxu0 0.0
        %370 = vmatpush1.msra.mxu0 0.0
        %371 = vmatprep.subr.mxu0 0.0
        %372 = vmatpush1.msra.mxu0 0.0
        %373 = vmatprep.subr.mxu0 0.0
        %374 = vmatpush1.msra.mxu0 0.0
        %375 = vmatprep.subr.mxu0 0.0
        %376 = vmatpush1.msra.mxu0 0.0
        %377 = vmatprep.subr.mxu0 0.0
        %378 = vmatpush1.msra.mxu0 0.0
        %379 = vmatprep.subr.mxu0 0.0
        %380 = vmatpush1.msra.mxu0 0.0
        %381 = vmatprep.subr.mxu0 0.0
        %382 = vmatpush1.msra.mxu0 0.0
        %383 = vmatprep.subr.mxu0 0.0
        %384 = vmatpush1.msra.mxu0 0.0
        %385 = vmatprep.subr.mxu0 0.0
        %386 = vmatpush1.msra.mxu0 0.0
        %387 = vmatprep.subr.mxu0 0.0
        %388 = vmatpush1.msra.mxu0 0.0
        %389 = vmatprep.mubr.f32.mxu0 0.0
        %390 = vmatmul.mubr.f32.gmra.mrb[0].mxu0 %v213
        %v391 = vpop.f32.mrb[0].mxu0
        %v392 = vadd.f32 %v317, %v391
        %v393 = vpop.f32.mrb[0].mxu0
        %394 = vmatprep.mubr.f32.mxu0 0.0
        %395 = vmatmul.mubr.f32.gmra.mrb[0].mxu0 %v214
        %v396 = vpop.f32.mrb[0].mxu0
        %v397 = vadd.f32 %v322, %v396
        %v398 = vpop.f32.mrb[0].mxu0
        %399 = vdwg.mxu0
        %v400 = vld [vmem:[%s211 + $0x2] sm:$0xff]
        %v401 = vld [vmem:[%s211 + $0xa] sm:$0xff]
        %s402 = scalar_lea.vmem [#allocation2], 256
        %v403 = vld [vmem:[%s402] sm:$0xff]
        %v404 = vld [vmem:[%s402 + $0x8] sm:$0xff]
        %v405 = vld [vmem:[%s402 + $0x10] sm:$0xff]
        %v406 = vld [vmem:[%s402 + $0x18] sm:$0xff]
        %v407 = vld [vmem:[%s402 + $0x20] sm:$0xff]
        %v408 = vld [vmem:[%s402 + $0x28] sm:$0xff]
        %v409 = vld [vmem:[%s402 + $0x30] sm:$0xff]
        %v410 = vld [vmem:[%s402 + $0x38] sm:$0xff]
        %v411 = vld [vmem:[%s402 + $0x40] sm:$0xff]
        %v412 = vld [vmem:[%s402 + $0x48] sm:$0xff]
        %v413 = vld [vmem:[%s402 + $0x50] sm:$0xff]
        %v414 = vld [vmem:[%s402 + $0x58] sm:$0xff]
        %v415 = vld [vmem:[%s402 + $0x60] sm:$0xff]
        %v416 = vld [vmem:[%s402 + $0x68] sm:$0xff]
        %v417 = vld [vmem:[%s402 + $0x70] sm:$0xff]
        %v418 = vld [vmem:[%s402 + $0x78] sm:$0xff]
        %419 = vmatprep.subr.mxu0 0.0
        %420 = vmatpush1.msra.mxu0 %v403
        %421 = vmatprep.subr.mxu0 0.0
        %422 = vmatpush1.msra.mxu0 %v404
        %423 = vmatprep.subr.mxu0 0.0
        %424 = vmatpush1.msra.mxu0 %v405
        %425 = vmatprep.subr.mxu0 0.0
        %426 = vmatpush1.msra.mxu0 %v406
        %427 = vmatprep.subr.mxu0 0.0
        %428 = vmatpush1.msra.mxu0 %v407
        %429 = vmatprep.subr.mxu0 0.0
        %430 = vmatpush1.msra.mxu0 %v408
        %431 = vmatprep.subr.mxu0 0.0
        %432 = vmatpush1.msra.mxu0 %v409
        %433 = vmatprep.subr.mxu0 0.0
        %434 = vmatpush1.msra.mxu0 %v410
        %435 = vmatprep.subr.mxu0 0.0
        %436 = vmatpush1.msra.mxu0 %v411
        %437 = vmatprep.subr.mxu0 0.0
        %438 = vmatpush1.msra.mxu0 %v412
        %439 = vmatprep.subr.mxu0 0.0
        %440 = vmatpush1.msra.mxu0 %v413
        %441 = vmatprep.subr.mxu0 0.0
        %442 = vmatpush1.msra.mxu0 %v414
        %443 = vmatprep.subr.mxu0 0.0
        %444 = vmatpush1.msra.mxu0 %v415
        %445 = vmatprep.subr.mxu0 0.0
        %446 = vmatpush1.msra.mxu0 %v416
        %447 = vmatprep.subr.mxu0 0.0
        %448 = vmatpush1.msra.mxu0 %v417
        %449 = vmatprep.subr.mxu0 0.0
        %450 = vmatpush1.msra.mxu0 %v418
        %451 = vmatprep.subr.mxu0 0.0
        %452 = vmatpush1.msra.mxu0 0.0
        %453 = vmatprep.subr.mxu0 0.0
        %454 = vmatpush1.msra.mxu0 0.0
        %455 = vmatprep.subr.mxu0 0.0
        %456 = vmatpush1.msra.mxu0 0.0
        %457 = vmatprep.subr.mxu0 0.0
        %458 = vmatpush1.msra.mxu0 0.0
        %459 = vmatprep.subr.mxu0 0.0
        %460 = vmatpush1.msra.mxu0 0.0
        %461 = vmatprep.subr.mxu0 0.0
        %462 = vmatpush1.msra.mxu0 0.0
        %463 = vmatprep.subr.mxu0 0.0
        %464 = vmatpush1.msra.mxu0 0.0
        %465 = vmatprep.subr.mxu0 0.0
        %466 = vmatpush1.msra.mxu0 0.0
        %467 = vmatprep.subr.mxu0 0.0
        %468 = vmatpush1.msra.mxu0 0.0
        %469 = vmatprep.subr.mxu0 0.0
        %470 = vmatpush1.msra.mxu0 0.0
        %471 = vmatprep.subr.mxu0 0.0
        %472 = vmatpush1.msra.mxu0 0.0
        %473 = vmatprep.subr.mxu0 0.0
        %474 = vmatpush1.msra.mxu0 0.0
        %475 = vmatprep.subr.mxu0 0.0
        %476 = vmatpush1.msra.mxu0 0.0
        %477 = vmatprep.subr.mxu0 0.0
        %478 = vmatpush1.msra.mxu0 0.0
        %479 = vmatprep.subr.mxu0 0.0
        %480 = vmatpush1.msra.mxu0 0.0
        %481 = vmatprep.subr.mxu0 0.0
        %482 = vmatpush1.msra.mxu0 0.0
        %483 = vmatprep.mubr.f32.mxu0 0.0
        %484 = vmatmul.mubr.f32.gmra.mrb[0].mxu0 %v400
        %v485 = vpop.f32.mrb[0].mxu0
        %v486 = vadd.f32 0.0, %v485
        %v487 = vpop.f32.mrb[0].mxu0
        %488 = vmatprep.mubr.f32.mxu0 0.0
        %489 = vmatmul.mubr.f32.gmra.mrb[0].mxu0 %v401
        %v490 = vpop.f32.mrb[0].mxu0
        %v491 = vadd.f32 0.0, %v490
        %v492 = vpop.f32.mrb[0].mxu0
        %493 = vdwg.mxu0
        %v494 = vadd.f32 %v392, %v486
        %v495 = vadd.f32 %v397, %v491
        %v496 = vld [vmem:[%s2] sm:$0x1]
        %v498 = vlaneseq
        %v499 = vshrl.u32 %v498, 7
        %v500 = vsub.s32 0, %v499
        %v501 = vrot.slane %v496, %v500
        %v503 = vadd.f32 %v494, %v501
        %v504 = vadd.f32 %v495, %v501
        %505 = vst [vmem:[%s202] sm:$0xff] %v503
        %506 = vst [vmem:[%s202 + $0x8] sm:$0xff] %v504
        %s507 = sand.u32 %s110, 1
        %s508 = scalar_lea.sflag [#allocation4], %s507
        %s509 = sand.u32 %s110, 1
        %s510 = smul.addr %s509, 16
        %s511 = scalar_lea.vmem [#allocation5], %s510
        // Predicated region
        $region37: #{tpu_custom_call.1} parent=31 // pred_check
          %p512 = pneg %p120
        $region38: #{tpu_custom_call.1} parent=31 // pred_check_branch
          %514 = sbr.rel (%p512) target = $region40
        $region39: #{tpu_custom_call.1} parent=31 // pred_region
          %s515 = smul.u32 2, %s23
          %s517 = ssub.s32 256, 256
          %518 = vsyncadd %s508, %s517
          %s519 = smul.addr %s22, 2
          %s520 = sadd.s32 %s515, %s519
          %s521 = smul.addr %s520, 128
          %s522 = scalar_lea.hbm %s3, %s521
          %s523 = sshll.u32 %s511, 4
          %s524 = int_to_ptr.vmem [resolvable:$true] %s523
          %529 = dma.vmem_to_hbm [thread:$0]  %s524, 256, %s522, %s508, 128, 128, 8
        $region40: #{tpu_custom_call.1} parent=31 // pred_fallthru
          _
      $region32: #{tpu_custom_call.1} parent=5 // pred_fallthru
        _
      %p530 = scmp.le.s32.totalorder 2, %s13
      // Predicated region
      $region41: #{tpu_custom_call.1} parent=5 // pred_check
        %p531 = pneg %p530
      $region42: #{tpu_custom_call.1} parent=5 // pred_check_branch
        %533 = sbr.rel (%p531) target = $region44
      $region43: #{tpu_custom_call.1} parent=5 // pred_region
        %s534 = ssub.s32 %s13, 2
        // Predicated region
        $region45: #{tpu_custom_call.1} parent=43 // pred_check
          %p535 = pneg %p126
        $region46: #{tpu_custom_call.1} parent=43 // pred_check_branch
          %537 = sbr.rel (%p535) target = $region48
        $region47: #{tpu_custom_call.1} parent=43 // pred_region
          %s538 = sand.u32 %s111, 1
          %s539 = scalar_lea.sflag [#allocation4], %s538
          %s540 = sand.u32 %s111, 1
          %s541 = smul.addr %s540, 16
          %s542 = scalar_lea.vmem [#allocation5], %s541
          %543 = dma.done %s539, 256
        $region48: #{tpu_custom_call.1} parent=43 // pred_fallthru
          _
      $region44: #{tpu_custom_call.1} parent=5 // pred_fallthru
        _
    $region6: #{tpu_custom_call.1} parent=1 // loop_footer
      %s17 = sadd.s32 1, %s13
    $region7: #{tpu_custom_call.1} parent=1 // loop_footer_branch
      %12 = sbr.rel target = $region3
    $region8: #{tpu_custom_call.1} parent=1 // loop_exit
      _
    %544 = vsyncpa [#allocation3], 1
    %s545 = scalar_lea.sflag [#allocation3], 1
    %546 = vsyncpa %s545, 1
    %547 = vsyncpa [#allocation4], 1
    %s548 = scalar_lea.sflag [#allocation4], 1
    %549 = vsyncpa %s548, 1

</llo_original>
